<compile_context>
chip_gen: v7x
topology: tpu7x:2x2x1
jax: 0.10.0
libtpu: 0.0.40
codegen_flags: <defaults>
</compile_context>

<pallas_src>
import functools

import jax
import jax.numpy as jnp
from jax import lax
from jax.experimental import pallas as pl
from jax.experimental.pallas import tpu as pltpu

THRESH = 0.5
MARGIN = 0.7
SCALE_POS = 2.0
SCALE_NEG = 40.0
_BIG = 1e16


def _round_up(x, m):
    return (x + m - 1) // m * m


# ----------------------------------------------------------------------------
# L2-normalization kernel (row-tiled): x * rsqrt(sum(x^2) + 1e-12)
# ----------------------------------------------------------------------------
def _l2norm_kernel(x_ref, o_ref):
    x = x_ref[...]
    normp = jnp.sum(x * x, axis=1, keepdims=True) + 1e-12
    o_ref[...] = x * lax.rsqrt(normp)


def _l2_normalize(x_pad, tm):
    n_pad, d_pad = x_pad.shape
    return pl.pallas_call(
        _l2norm_kernel,
        out_shape=jax.ShapeDtypeStruct((n_pad, d_pad), jnp.float32),
        grid=(n_pad // tm,),
        in_specs=[pl.BlockSpec((tm, d_pad), lambda i: (i, 0))],
        out_specs=pl.BlockSpec((tm, d_pad), lambda i: (i, 0)),
        compiler_params=pltpu.CompilerParams(
            dimension_semantics=("parallel",)),
    )(x_pad)


# ----------------------------------------------------------------------------
# Loss kernel: one (TM, N) row-slab of all four similarity matrices per step.
# ----------------------------------------------------------------------------
def _loss_kernel(n_real,
                 lab_col_ref, lab_row_ref,
                 ncl_blk_ref, ncb_blk_ref,
                 ncl_all_ref, ncb_all_ref,
                 out_ref):
    ncl_blk = ncl_blk_ref[...]              # (TM, D)
    ncb_blk = ncb_blk_ref[...]              # (TM, D)
    ncl_all = ncl_all_ref[...]              # (N, D)
    ncb_all = ncb_all_ref[...]              # (N, D)

    tm = ncl_blk.shape[0]
    n_tot = ncl_all.shape[0]
    row0 = pl.program_id(0) * tm

    # Masks: built once per row block, shared by all four ms terms.
    lab_col = lab_col_ref[...]              # (TM, 1) int32
    lab_row = lab_row_ref[...]              # (1, N)  int32
    pos_mask = lab_col == lab_row           # (TM, N) bool

    col_ids = lax.broadcasted_iota(jnp.int32, (tm, n_tot), 1)
    row_ids = lax.broadcasted_iota(jnp.int32, (tm, n_tot), 0) + row0
    diag = row_ids == col_ids
    col_valid = col_ids < n_real                                    # mask padded cols
    row_valid = (lax.broadcasted_iota(jnp.int32, (tm, 1), 0) + row0) < n_real

    not_pos = jnp.logical_not(pos_mask)
    p_sel_nodiag = jnp.logical_and(
        jnp.logical_and(pos_mask, jnp.logical_not(diag)), col_valid)
    p_sel_full = jnp.logical_and(pos_mask, col_valid)
    n_sel = jnp.logical_and(not_pos, col_valid)

    # Per-element exponent scale: positives -> -SCALE_POS, everything else
    # (negatives / diag / padding, which never reach the positive sum) ->
    # SCALE_NEG.  Lets each ms term use a single exp map (EUP work halved).
    sc_nodiag = jnp.where(p_sel_nodiag, -SCALE_POS, SCALE_NEG)
    sc_full = jnp.where(p_sel_full, -SCALE_POS, SCALE_NEG)

    # MXU: (TM, D) x (N, D)^T, contracting on the feature axis, f32 accumulate.
    dims = (((1,), (1,)), ((), ()))
    sim_clcl = lax.dot_general(ncl_blk, ncl_all, dims, preferred_element_type=jnp.float32)
    sim_cbcb = lax.dot_general(ncb_blk, ncb_all, dims, preferred_element_type=jnp.float32)
    sim_cbcl = lax.dot_general(ncb_blk, ncl_all, dims, preferred_element_type=jnp.float32)
    sim_clcb = lax.dot_general(ncl_blk, ncb_all, dims, preferred_element_type=jnp.float32)

    def ms_terms(sim, p_sel, sel_scale):
        # Single exp per slab; at positive positions this equals pos_exp, at
        # negative positions it equals neg_exp -- the only places each is used.
        e = jnp.exp(sel_scale * (sim - THRESH))
        p_sim = jnp.where(p_sel, sim, _BIG)
        n_sim = jnp.where(n_sel, sim, -_BIG)
        min_p = jnp.min(p_sim, axis=1, keepdims=True)
        max_n = jnp.max(n_sim, axis=1, keepdims=True)
        hard_p = jnp.sum(jnp.where(p_sim - MARGIN < max_n, e, 0.0),
                         axis=1, keepdims=True)
        hard_n = jnp.sum(jnp.where(n_sim + MARGIN > min_p, e, 0.0),
                         axis=1, keepdims=True)
        pos_loss = jnp.sum(jnp.where(row_valid, jnp.log(1.0 + hard_p), 0.0)) / SCALE_POS
        neg_loss = jnp.sum(jnp.where(row_valid, jnp.log(1.0 + hard_n), 0.0)) / SCALE_NEG
        return pos_loss + neg_loss

    # S_clcl / S_cbcb are symmetric  =>  ms(S) == ms(S.T): compute once, x2.
    loss2 = 2.0 * ms_terms(sim_clcl, p_sel_nodiag, sc_nodiag)
    loss3 = 2.0 * ms_terms(sim_cbcb, p_sel_nodiag, sc_nodiag)
    # S_cbcl.T == S_clcb (computed directly on the MXU, no XLU transpose).
    loss4 = (ms_terms(sim_cbcl, p_sel_full, sc_full)
             + ms_terms(sim_clcb, p_sel_full, sc_full))

    total = loss2 + loss3 + loss4
    # Lane-dense (8,128) output block; wrapper reads element [0,0] of each block.
    out_ref[...] = jnp.broadcast_to(total, out_ref.shape).astype(jnp.float32)


def dual_ms_loss_pallas(x_contactless, x_contactbased, labels, *,
                        tm=128, vmem_limit_bytes=40 * 1024 * 1024):
    """Scalar MS loss (float32).

    Only x_contactless, x_contactbased and labels influence the PyTorch forward;
    the token / domain-classifier arguments are unused there.
    """
    n, d = x_contactless.shape

    # Row-block size: multiple of 8 sublanes. For very large N (esp. on v7x with
    # 64 MiB physical VMEM) reduce `tm` so the live (TM, N) f32 temporaries fit.
    tm_eff = min(tm, _round_up(n, 8))
    n_pad = _round_up(n, tm_eff)
    d_pad = _round_up(d, 128)          # lane-dense feature axis (zeros are inert)
    n_blocks = n_pad // tm_eff

    f32 = jnp.float32
    x_cl = jnp.pad(x_contactless.astype(f32), ((0, n_pad - n), (0, d_pad - d)))
    x_cb = jnp.pad(x_contactbased.astype(f32), ((0, n_pad - n), (0, d_pad - d)))
    lab = jnp.pad(labels.astype(jnp.int32), (0, n_pad - n), constant_values=-1)
    lab_col = lab.reshape(n_pad, 1)
    lab_row = lab.reshape(1, n_pad)

    ncl = _l2_normalize(x_cl, tm_eff)
    ncb = _l2_normalize(x_cb, tm_eff)

    kernel = functools.partial(_loss_kernel, n)

    partial_losses = pl.pallas_call(
        kernel,
        out_shape=jax.ShapeDtypeStruct((n_blocks, 8, 128), jnp.float32),
        grid=(n_blocks,),
        in_specs=[
            pl.BlockSpec((tm_eff, 1), lambda i: (i, 0)),        # labels, row-block col
            pl.BlockSpec((1, n_pad), lambda i: (0, 0)),         # labels, full row
            pl.BlockSpec((tm_eff, d_pad), lambda i: (i, 0)),    # ncl row block
            pl.BlockSpec((tm_eff, d_pad), lambda i: (i, 0)),    # ncb row block
            pl.BlockSpec((n_pad, d_pad), lambda i: (0, 0)),     # ncl full (matmul RHS)
            pl.BlockSpec((n_pad, d_pad), lambda i: (0, 0)),     # ncb full (matmul RHS)
        ],
        out_specs=pl.BlockSpec((1, 8, 128), lambda i: (i, 0, 0)),
        compiler_params=pltpu.CompilerParams(
            dimension_semantics=("parallel",),       # shards blocks across TCs (v7x)
            vmem_limit_bytes=vmem_limit_bytes,
        ),
    )(lab_col, lab_row, ncl, ncb, ncl, ncb)

    return jnp.sum(partial_losses[:, 0, 0])


# ----------------------------------------------------------------------------
# Pure-JAX reference mirroring the PyTorch module (all 6 ms calls, transposes).
# ----------------------------------------------------------------------------
def _ref_ms(sim, labels, exclude_diag):
    n = sim.shape[0]
    pos_exp = jnp.exp(-SCALE_POS * (sim - THRESH))
    neg_exp = jnp.exp(SCALE_NEG * (sim - THRESH))
    pos_mask = (labels[:, None] == labels[None, :]).astype(jnp.float32)
    if exclude_diag:
        pm = pos_mask + jnp.eye(n, dtype=jnp.float32)
        p_sel = pm == 1.0
        n_sel = pm == 0.0
    else:
        p_sel = pos_mask == 1.0
        n_sel = (1.0 - pos_mask) == 1.0
    P = jnp.where(p_sel, sim, _BIG)
    N = jnp.where(n_sel, sim, -_BIG)
    minP = jnp.min(P, axis=1, keepdims=True)
    maxN = jnp.max(N, axis=1, keepdims=True)
    hardP = jnp.sum(jnp.where(P - MARGIN < maxN, pos_exp, 0.0), axis=-1)
    hardN = jnp.sum(jnp.where(N + MARGIN > minP, neg_exp, 0.0), axis=-1)
    return (jnp.sum(jnp.log(1.0 + hardP)) / SCALE_POS
            + jnp.sum(jnp.log(1.0 + hardN)) / SCALE_NEG)


def _ref_loss(x_cl, x_cb, labels):
    def l2n(x):
        return x / jnp.sqrt(jnp.sum(x * x, axis=1, keepdims=True) + 1e-12)
    ncl, ncb = l2n(x_cl), l2n(x_cb)
    s_clcl = ncl @ ncl.T
    s_cbcb = ncb @ ncb.T
    s_cbcl = ncb @ ncl.T
    loss2 = _ref_ms(s_clcl, labels, True) + _ref_ms(s_clcl.T, labels, True)
    loss3 = _ref_ms(s_cbcb, labels, True) + _ref_ms(s_cbcb.T, labels, True)
    loss4 = _ref_ms(s_cbcl, labels, False) + _ref_ms(s_cbcl.T, labels, False)
    return loss4 + loss2 + loss3


if __name__ == "__main__":
    key = jax.random.PRNGKey(0)
    k1, k2, k3 = jax.random.split(key, 3)

    N, D = 20, 48  # small batch of embeddings
    x_contactless = jax.random.normal(k1, (N, D), dtype=jnp.float32)
    x_contactbased = jax.random.normal(k2, (N, D), dtype=jnp.float32)
    labels = jax.random.randint(k3, (N,), 0, 5).astype(jnp.int32)

    # tm=8 exercises a multi-step grid (3 row blocks) plus row/column padding.
    loss = dual_ms_loss_pallas(x_contactless, x_contactbased, labels, tm=8)
    loss = jax.block_until_ready(loss)

    ref = _ref_loss(x_contactless, x_contactbased, labels)
    assert jnp.allclose(loss, ref, rtol=1e-3, atol=1e-3), (loss, ref)

    print("KERNEL_OK")
</pallas_src>

<mosaic_0001>
module attributes {stable_mosaic.version = 11 : i64} {
  func.func @_l2norm_kernel(%arg0: i32, %arg1: memref<8x128xf32, #tpu.memory_space<vmem>>, %arg2: memref<8x128xf32, #tpu.memory_space<vmem>>) attributes {dimension_semantics = [#tpu.dimension_semantics<parallel>], iteration_bounds = array<i64: 3>, scalar_prefetch = 0 : i64, scratch_operands = 0 : i64, tpu.core_type = #tpu.core_type<tc>, window_params = [{transform_indices = @transform_0, window_bounds = array<i64: 8, 128>}, {transform_indices = @transform_1, window_bounds = array<i64: 8, 128>}]} {
    %c0 = arith.constant 0 : index
    %c0_0 = arith.constant 0 : index
    %0 = vector.load %arg1[%c0, %c0_0] : memref<8x128xf32, #tpu.memory_space<vmem>>, vector<8x128xf32>
    %1 = arith.mulf %0, %0 : vector<8x128xf32>
    %cst = arith.constant dense<0.000000e+00> : vector<8xf32>
    %2 = vector.multi_reduction <add>, %1, %cst [1] : vector<8x128xf32> to vector<8xf32>
    %3 = vector.shape_cast %2 : vector<8xf32> to vector<8x1xf32>
    %cst_1 = arith.constant 9.99999996E-13 : f32
    %4 = vector.broadcast %cst_1 : f32 to vector<8x1xf32>
    %5 = arith.addf %3, %4 : vector<8x1xf32>
    %6 = math.rsqrt %5 : vector<8x1xf32>
    %7 = vector.broadcast %6 : vector<8x1xf32> to vector<8x128xf32>
    %8 = arith.mulf %0, %7 : vector<8x128xf32>
    %c0_2 = arith.constant 0 : index
    %c0_3 = arith.constant 0 : index
    %9 = vector.load %arg2[%c0_2, %c0_3] : memref<8x128xf32, #tpu.memory_space<vmem>>, vector<8x128xf32>
    tpu.vector_store %arg2[%c0_2, %c0_3], %8 {strides = array<i32>} : memref<8x128xf32, #tpu.memory_space<vmem>>, vector<8x128xf32>,
    return
  }
  func.func @transform_0(%arg0: i32) -> (i32, i32) {
    %c0_i32 = arith.constant 0 : i32
    %c0_i32_0 = arith.constant 0 : i32
    return %arg0, %c0_i32 : i32, i32
  }
  func.func @transform_1(%arg0: i32) -> (i32, i32) {
    %c0_i32 = arith.constant 0 : i32
    %c0_i32_0 = arith.constant 0 : i32
    return %arg0, %c0_i32 : i32, i32
  }
}

</mosaic_0001>

<llo_original>
// kernel: tpu_custom_call.1
$region0: #{tpu_custom_call.1}
  #allocation0 [shape = 'u32[]', space=smem, size = 0x4, offset = 0x4, fixed_abs, tag = 'smem constant byte address 0x4 - core index']
  #allocation1 [shape = 'u32[144,128]{1,0:T(1,128)}', space=vmem, size = 0x12000, scoped, tag = 'internal scratch']
  %s0 = inlined_call_operand.hbm [shape: f32[24,128], index: 0, kind: input, shape index: {}]
  %s1 = inlined_call_operand.hbm [shape: f32[24,128], index: 1, kind: output, shape index: {}]
  %s2 = sld [smem:[#allocation0]]
  $region41: #{tpu_custom_call.1} parent=0
    _
  %s4 = ssub.s32 1, %s2
  %s5 = scalar_select 0, %s4, %s2
  $region1: #{tpu_custom_call.1} parent=0
    #allocation2 [shape = 'u8[8192]{0}', space=vmem, size = 0x2000, scoped, tag = 'input window, operand 0']
    #allocation3 [shape = 's32[2]{0}', space=sflag, size = 0x8, scoped, tag = 'scoped memory for tpu_custom_call.1']
    #allocation4 [shape = 's32[2]{0}', space=sflag, size = 0x8, scoped, tag = 'scoped memory for tpu_custom_call.1']
    #allocation5 [shape = 'u8[8192]{0}', space=vmem, size = 0x2000, scoped, tag = 'output window, operand 0']
    %6 = vsyncpa [#allocation3], 0
    %s7 = scalar_lea.sflag [#allocation3], 1
    %8 = vsyncpa %s7, 0
    %9 = vsyncpa [#allocation4], 0
    %s10 = scalar_lea.sflag [#allocation4], 1
    %11 = vsyncpa %s10, 0
    loop: start=0, step=1, limit=5
    $region2: #{tpu_custom_call.1} parent=1 // loop_pre_header
      _
    $region3: #{tpu_custom_call.1} parent=1 // loop_header
      %s13 = sphi 0, %s17
      %p14 = scmp.ge.s32.totalorder %s13, 5
      %s23 = sphi 0, %s25
      %s26 = sphi 0, %s23
      %s27 = sphi 0, %s26
      %s43 = sphi 0, %s27
      %s49 = sphi 0, %s51
      %s52 = sphi 0, %s49
      %s53 = sphi 0, %s52
      %s69 = sphi 0, %s53
    $region4: #{tpu_custom_call.1} parent=1 // loop_header_branch
      %16 = sbr.rel (%p14) target = $region8
    $region5: #{tpu_custom_call.1} parent=1 // loop_body
      %s18 = ssub.s32 %s13, 1
      %s19 = ssub.s32 %s13, 2
      %s20 = sadd.s32 %s13, 1
      %s21 = ssub.s32 %s13, %s20
      %p22 = scmp.eq.s32.totalorder %s21, 0
      %s24 = sadd.s32 %s23, 1
      %s25 = scalar_select %p22, %s23, %s24
      %p28 = pneg %p22
      %p29 = scmp.eq.s32.totalorder %s13, 2
      %p30 = por %p28, %p29
      %p31 = scmp.ne.s32.totalorder %s23, %s26
      %p32 = scmp.eq.s32.totalorder %s13, 0
      %p33 = por %p31, %p32
      %p34 = scmp.ne.s32.totalorder %s23, %s26
      %p35 = scmp.eq.s32.totalorder %s18, 2
      %p36 = por %p34, %p35
      %p37 = scmp.ne.s32.totalorder %s26, %s27
      %p38 = scmp.eq.s32.totalorder %s18, 0
      %p39 = por %p37, %p38
      %p40 = scmp.ne.s32.totalorder %s26, %s27
      %p41 = scmp.eq.s32.totalorder %s19, 2
      %p42 = por %p40, %p41
      %p44 = scmp.ne.s32.totalorder %s27, %s43
      %p45 = scmp.eq.s32.totalorder %s19, 0
      %p46 = por %p44, %p45
      %s47 = ssub.s32 %s13, %s20
      %p48 = scmp.eq.s32.totalorder %s47, 0
      %s50 = sadd.s32 %s49, 1
      %s51 = scalar_select %p48, %s49, %s50
      %p54 = pneg %p48
      %p55 = scmp.eq.s32.totalorder %s13, 2
      %p56 = por %p54, %p55
      %p57 = scmp.ne.s32.totalorder %s49, %s52
      %p58 = scmp.eq.s32.totalorder %s13, 0
      %p59 = por %p57, %p58
      %p60 = scmp.ne.s32.totalorder %s49, %s52
      %p61 = scmp.eq.s32.totalorder %s18, 2
      %p62 = por %p60, %p61
      %p63 = scmp.ne.s32.totalorder %s52, %s53
      %p64 = scmp.eq.s32.totalorder %s18, 0
      %p65 = por %p63, %p64
      %p66 = scmp.ne.s32.totalorder %s52, %s53
      %p67 = scmp.eq.s32.totalorder %s19, 2
      %p68 = por %p66, %p67
      %p70 = scmp.ne.s32.totalorder %s53, %s69
      %p71 = scmp.eq.s32.totalorder %s19, 0
      %p72 = por %p70, %p71
      %p73 = scmp.le.s32.totalorder 1, %s13
      %p74 = scmp.lt.s32.totalorder %s13, 4
      %p75 = pnand %p73, %p74
      %p76 = pneg %p75
      // Predicated region
      $region9: #{tpu_custom_call.1} parent=5 // pred_check
        _
      $region10: #{tpu_custom_call.1} parent=5 // pred_check_branch
        %78 = sbr.rel (%p75) target = $region12
      $region11: #{tpu_custom_call.1} parent=5 // pred_region
        %s79 = ssub.s32 %s13, 1
      $region12: #{tpu_custom_call.1} parent=5 // pred_fallthru
        _
      %p80 = scmp.lt.s32.totalorder %s13, 3
      // Predicated region
      $region13: #{tpu_custom_call.1} parent=5 // pred_check
        %p81 = pneg %p80
      $region14: #{tpu_custom_call.1} parent=5 // pred_check_branch
        %83 = sbr.rel (%p81) target = $region16
      $region15: #{tpu_custom_call.1} parent=5 // pred_region
        // Predicated region
        $region17: #{tpu_custom_call.1} parent=15 // pred_check
          %p84 = pneg %p33
        $region18: #{tpu_custom_call.1} parent=15 // pred_check_branch
          %86 = sbr.rel (%p84) target = $region20
        $region19: #{tpu_custom_call.1} parent=15 // pred_region
          %s87 = sand.u32 %s23, 1
          %s88 = scalar_lea.sflag [#allocation3], %s87
          %s89 = sand.u32 %s23, 1
          %s90 = smul.addr %s89, 8
          %s91 = scalar_lea.vmem [#allocation2], %s90
          %s93 = ssub.s32 128, 128
          %94 = vsyncadd %s88, %s93
          %s95 = smul.addr %s13, 128
          %s96 = scalar_lea.hbm %s0, %s95
          %s98 = sshll.u32 %s91, 4
          %s99 = int_to_ptr.vmem [resolvable:$true] %s98
          %101 = dma.hbm_to_vmem [thread:$0]  %s96, 128, %s99, %s88
        $region20: #{tpu_custom_call.1} parent=15 // pred_fallthru
          _
      $region16: #{tpu_custom_call.1} parent=5 // pred_fallthru
        _
      %p102 = scmp.le.s32.totalorder 1, %s13
      %p103 = scmp.lt.s32.totalorder %s13, 4
      %p104 = pnand %p102, %p103
      %p105 = pneg %p104
      // Predicated region
      $region21: #{tpu_custom_call.1} parent=5 // pred_check
        _
      $region22: #{tpu_custom_call.1} parent=5 // pred_check_branch
        %107 = sbr.rel (%p104) target = $region24
      $region23: #{tpu_custom_call.1} parent=5 // pred_region
        %s108 = ssub.s32 %s13, 1
        %s109 = sand.u32 %s26, 1
        %s110 = scalar_lea.sflag [#allocation3], %s109
        %s111 = sand.u32 %s26, 1
        %s112 = smul.addr %s111, 8
        %s113 = scalar_lea.vmem [#allocation2], %s112
        // Predicated region
        $region25: #{tpu_custom_call.1} parent=23 // pred_check
          %p114 = pneg %p39
        $region26: #{tpu_custom_call.1} parent=23 // pred_check_branch
          %116 = sbr.rel (%p114) target = $region28
        $region27: #{tpu_custom_call.1} parent=23 // pred_region
          %117 = dma.done %s110, 128
        $region28: #{tpu_custom_call.1} parent=23 // pred_fallthru
          _
        %s118 = sand.u32 %s26, 1
        %s119 = scalar_lea.sflag [#allocation3], %s118
        %s120 = sand.u32 %s26, 1
        %s121 = smul.addr %s120, 8
        %s122 = scalar_lea.vmem [#allocation2], %s121
        %p123 = pneg %p39
        %p124 = pneg %p36
        %p125 = pneg %p65
        %p126 = pneg %p62
        %s127 = sand.u32 %s52, 1
        %s128 = scalar_lea.sflag [#allocation4], %s127
        %s129 = sand.u32 %s52, 1
        %s130 = smul.addr %s129, 8
        %s131 = scalar_lea.vmem [#allocation5], %s130
        %v132 = vld [vmem:[%s113] sm:$0xff]
        %v133 = vmul.f32 %v132, %v132
        %134 = vadd.xlane.f32.xlu0 %v133
        %v135 = vpop.xlane.xlu0 %134
        %v136 = vadd.f32 %v135, 1e-12
        %v137 = vrsqrt.pop %v136
        %v138 = vmul.f32 %v132, %v137
        %139 = vst [vmem:[%s131] sm:$0xff] %v138
        %s140 = sand.u32 %s52, 1
        %s141 = scalar_lea.sflag [#allocation4], %s140
        %s142 = sand.u32 %s52, 1
        %s143 = smul.addr %s142, 8
        %s144 = scalar_lea.vmem [#allocation5], %s143
        // Predicated region
        $region29: #{tpu_custom_call.1} parent=23 // pred_check
          %p145 = pneg %p62
        $region30: #{tpu_custom_call.1} parent=23 // pred_check_branch
          %147 = sbr.rel (%p145) target = $region32
        $region31: #{tpu_custom_call.1} parent=23 // pred_region
          %s149 = ssub.s32 128, 128
          %150 = vsyncadd %s141, %s149
          %s151 = smul.addr %s18, 128
          %s152 = scalar_lea.hbm %s1, %s151
          %s154 = sshll.u32 %s144, 4
          %s155 = int_to_ptr.vmem [resolvable:$true] %s154
          %157 = dma.vmem_to_hbm [thread:$0]  %s155, 128, %s152, %s141
        $region32: #{tpu_custom_call.1} parent=23 // pred_fallthru
          _
      $region24: #{tpu_custom_call.1} parent=5 // pred_fallthru
        _
      %p158 = scmp.le.s32.totalorder 2, %s13
      // Predicated region
      $region33: #{tpu_custom_call.1} parent=5 // pred_check
        %p159 = pneg %p158
      $region34: #{tpu_custom_call.1} parent=5 // pred_check_branch
        %161 = sbr.rel (%p159) target = $region36
      $region35: #{tpu_custom_call.1} parent=5 // pred_region
        %s162 = ssub.s32 %s13, 2
        // Predicated region
        $region37: #{tpu_custom_call.1} parent=35 // pred_check
          %p163 = pneg %p68
        $region38: #{tpu_custom_call.1} parent=35 // pred_check_branch
          %165 = sbr.rel (%p163) target = $region40
        $region39: #{tpu_custom_call.1} parent=35 // pred_region
          %s166 = sand.u32 %s53, 1
          %s167 = scalar_lea.sflag [#allocation4], %s166
          %s168 = sand.u32 %s53, 1
          %s169 = smul.addr %s168, 8
          %s170 = scalar_lea.vmem [#allocation5], %s169
          %171 = dma.done %s167, 128
        $region40: #{tpu_custom_call.1} parent=35 // pred_fallthru
          _
      $region36: #{tpu_custom_call.1} parent=5 // pred_fallthru
        _
    $region6: #{tpu_custom_call.1} parent=1 // loop_footer
      %s17 = sadd.s32 1, %s13
    $region7: #{tpu_custom_call.1} parent=1 // loop_footer_branch
      %12 = sbr.rel target = $region3
    $region8: #{tpu_custom_call.1} parent=1 // loop_exit
      _
    %172 = vsyncpa [#allocation3], 1
    %s173 = scalar_lea.sflag [#allocation3], 1
    %174 = vsyncpa %s173, 1
    %175 = vsyncpa [#allocation4], 1
    %s176 = scalar_lea.sflag [#allocation4], 1
    %177 = vsyncpa %s176, 1

</llo_original>
